<compile_context>
chip_gen: v7x
topology: tpu7x:2x2x1
jax: 0.10.0
libtpu: 0.0.40
codegen_flags: <defaults>
</compile_context>

<pallas_src>
import functools
import math

import jax
import jax.numpy as jnp
from jax import lax
from jax.experimental import pallas as pl
from jax.experimental.pallas import tpu as pltpu


_MASK_VALUE = -1e30
_VMEM_LIMIT = 32 * 1024 * 1024          # safe on v5e/v6e/v7x scoped VMEM


# ----------------------------- tiling helpers ------------------------------

def _round_up(n, m):
    return ((n + m - 1) // m) * m


def _pick_tile(dim, target, align):
    """Largest `align`-aligned tile <= target that divides `dim` (falls back to
    the full dimension, which is always a legal block)."""
    if dim <= target:
        return dim
    t = (target // align) * align
    while t >= align:
        if dim % t == 0:
            return t
        t -= align
    return dim


def _largest_divisor_leq(n, cap):
    for d in range(min(n, cap), 0, -1):
        if n % d == 0:
            return d
    return 1


# ----------------------------- Pallas kernels ------------------------------

def _matmul_bias_kernel(x_ref, w_ref, b_ref, o_ref, acc_ref):
    """o = x @ w + b.  w is already (K, N); bias folded into the acc init."""
    @pl.when(pl.program_id(2) == 0)
    def _init():
        acc_ref[...] = jnp.broadcast_to(
            b_ref[...].astype(jnp.float32), acc_ref.shape)

    acc_ref[...] += jnp.dot(x_ref[...], w_ref[...],
                            preferred_element_type=jnp.float32)

    @pl.when(pl.program_id(2) == pl.num_programs(2) - 1)
    def _store():
        o_ref[...] = acc_ref[...].astype(o_ref.dtype)


def _flash_attn_kernel(q_ref, k_ref, v_ref, o_ref, m_sc, l_sc, acc_sc, qt_sc,
                       *, kv_len, tk, need_mask, heads_minor):
    """Online-softmax attention step.

    heads_minor=True : q/k/v/o blocks are (t, H, D) slices of the packed
                       (L, N, 3, H, D) qkv tensor; relayout to head-major is
                       done in VMEM (q once per q tile, cached in scratch).
    heads_minor=False: blocks are already head-major (bh, t, D).
    The 1/sqrt(D) scale is pre-folded into the projection weights.
    """
    ki = pl.program_id(2)

    @pl.when(ki == 0)
    def _init():
        m_sc[...] = jnp.full_like(m_sc, -jnp.inf)
        l_sc[...] = jnp.zeros_like(l_sc)
        acc_sc[...] = jnp.zeros_like(acc_sc)
        qt_sc[...] = (pltpu.einshape("qhd->hqd", q_ref[...]) if heads_minor
                      else q_ref[...])

    if heads_minor:
        k = pltpu.einshape("khd->hkd", k_ref[...])
        v = pltpu.einshape("khd->hkd", v_ref[...])
    else:
        k = k_ref[...]
        v = v_ref[...]

    # (h, tq, tk) scores; contraction on D, leading batch dim (canonical form).
    s = lax.dot_general(qt_sc[...], k,
                        dimension_numbers=(((2,), (2,)), ((0,), (0,))),
                        preferred_element_type=jnp.float32)

    if need_mask:                               # static: only if L was padded
        key_pos = ki * tk + lax.broadcasted_iota(jnp.int32, s.shape, 2)
        s = jnp.where(key_pos < kv_len, s, _MASK_VALUE)

    m_prev = m_sc[...]
    m_new = jnp.maximum(m_prev, s.max(axis=-1, keepdims=True))
    alpha = jnp.exp(m_prev - m_new)
    p = jnp.exp(s - m_new)
    l_sc[...] = alpha * l_sc[...] + p.sum(axis=-1, keepdims=True)
    m_sc[...] = m_new
    acc_sc[...] = alpha * acc_sc[...] + lax.dot_general(
        p.astype(v.dtype), v,
        dimension_numbers=(((2,), (1,)), ((0,), (0,))),
        preferred_element_type=jnp.float32)

    @pl.when(ki == pl.num_programs(2) - 1)
    def _store():
        out = acc_sc[...] * pl.reciprocal(l_sc[...], approx=True)
        if heads_minor:
            out = pltpu.einshape("hqd->qhd", out)
        o_ref[...] = out.astype(o_ref.dtype)


# ------------------------------- wrappers -----------------------------------

def _linear(x2d, w_t, b, *, out_dtype, tm=512, tn=512, tk=1024):
    """y = x2d @ w_t + b with pre-transposed weight w_t: (K, Nout), bias f32."""
    M, K = x2d.shape
    Nout = w_t.shape[1]

    # Pad ragged dims to aligned multiples so large problems always get real,
    # pipelined tiles (zero rows/cols contribute nothing to the result).
    Mp = _round_up(M, 8)
    Kp = _round_up(K, 128) if (K > 128 and K % 128) else K
    Np = _round_up(Nout, 128) if (Nout > 128 and Nout % 128) else Nout
    if Mp != M or Kp != K:
        x2d = jnp.pad(x2d, ((0, Mp - M), (0, Kp - K)))
    if Kp != K or Np != Nout:
        w_t = jnp.pad(w_t, ((0, Kp - K), (0, Np - Nout)))
    if Np != Nout:
        b = jnp.pad(b, (0, Np - Nout))

    tm = _pick_tile(Mp, tm, 8)
    tn = _pick_tile(Np, tn, 128)
    tk = _pick_tile(Kp, tk, 128)
    grid = (Mp // tm, Np // tn, Kp // tk)

    out = pl.pallas_call(
        _matmul_bias_kernel,
        out_shape=jax.ShapeDtypeStruct((Mp, Np), out_dtype),
        grid_spec=pltpu.PrefetchScalarGridSpec(
            num_scalar_prefetch=0,
            grid=grid,
            in_specs=[
                pl.BlockSpec((tm, tk), lambda i, j, k: (i, k)),
                pl.BlockSpec((tk, tn), lambda i, j, k: (k, j)),
                pl.BlockSpec((1, tn), lambda i, j, k: (0, j)),
            ],
            out_specs=pl.BlockSpec((tm, tn), lambda i, j, k: (i, j)),
            scratch_shapes=[pltpu.VMEM((tm, tn), jnp.float32)],
        ),
        compiler_params=pltpu.CompilerParams(
            dimension_semantics=("parallel", "parallel", "arbitrary"),
            vmem_limit_bytes=_VMEM_LIMIT),
    )(x2d, w_t, b.reshape(1, Np))

    if Mp != M or Np != Nout:
        out = out[:M, :Nout]
    return out


def _flash_attention_packed(qkv5, kv_len, tq, tk):
    """Flash attention straight off the packed (Lp, N, 3, H, D) qkv tensor."""
    Lp, N, _, H, D = qkv5.shape
    need_mask = Lp != kv_len
    grid = (N, Lp // tq, Lp // tk)
    kernel = functools.partial(_flash_attn_kernel, kv_len=kv_len, tk=tk,
                               need_mask=need_mask, heads_minor=True)
    # NOTE(v5e): if the streamed K/V DMA is exposed, add
    # pipeline_mode=pl.Buffered(3) to the k/v BlockSpecs below.
    return pl.pallas_call(
        kernel,
        out_shape=jax.ShapeDtypeStruct((Lp, N, H, D), qkv5.dtype),
        grid_spec=pltpu.PrefetchScalarGridSpec(
            num_scalar_prefetch=0,
            grid=grid,
            in_specs=[
                pl.BlockSpec((tq, None, None, H, D),
                             lambda n, qi, ki: (qi, n, 0, 0, 0)),
                pl.BlockSpec((tk, None, None, H, D),
                             lambda n, qi, ki: (ki, n, 1, 0, 0)),
                pl.BlockSpec((tk, None, None, H, D),
                             lambda n, qi, ki: (ki, n, 2, 0, 0)),
            ],
            out_specs=pl.BlockSpec((tq, None, H, D),
                                   lambda n, qi, ki: (qi, n, 0, 0)),
            scratch_shapes=[
                pltpu.VMEM((H, tq, 1), jnp.float32),     # running max
                pltpu.VMEM((H, tq, 1), jnp.float32),     # running sum
                pltpu.VMEM((H, tq, D), jnp.float32),     # output accumulator
                pltpu.VMEM((H, tq, D), qkv5.dtype),      # head-major q cache
            ],
        ),
        compiler_params=pltpu.CompilerParams(
            dimension_semantics=("parallel", "parallel", "arbitrary"),
            vmem_limit_bytes=_VMEM_LIMIT),
    )(qkv5, qkv5, qkv5)


def _flash_attention_headmajor(qh, kh, vh, kv_len, tq, tk, *, bh_target=8):
    """Fallback: flash attention over head-major (B*H, Lp, D) tensors."""
    BH, Lp, D = qh.shape
    need_mask = Lp != kv_len
    bh = _largest_divisor_leq(BH, bh_target)
    grid = (BH // bh, Lp // tq, Lp // tk)
    kernel = functools.partial(_flash_attn_kernel, kv_len=kv_len, tk=tk,
                               need_mask=need_mask, heads_minor=False)
    return pl.pallas_call(
        kernel,
        out_shape=jax.ShapeDtypeStruct((BH, Lp, D), qh.dtype),
        grid_spec=pltpu.PrefetchScalarGridSpec(
            num_scalar_prefetch=0,
            grid=grid,
            in_specs=[
                pl.BlockSpec((bh, tq, D), lambda b, qi, ki: (b, qi, 0)),
                pl.BlockSpec((bh, tk, D), lambda b, qi, ki: (b, ki, 0)),
                pl.BlockSpec((bh, tk, D), lambda b, qi, ki: (b, ki, 0)),
            ],
            out_specs=pl.BlockSpec((bh, tq, D), lambda b, qi, ki: (b, qi, 0)),
            scratch_shapes=[
                pltpu.VMEM((bh, tq, 1), jnp.float32),
                pltpu.VMEM((bh, tq, 1), jnp.float32),
                pltpu.VMEM((bh, tq, D), jnp.float32),
                pltpu.VMEM((bh, tq, D), qh.dtype),
            ],
        ),
        compiler_params=pltpu.CompilerParams(
            dimension_semantics=("parallel", "parallel", "arbitrary"),
            vmem_limit_bytes=_VMEM_LIMIT),
    )(qh, kh, vh)


def multihead_self_attention(x, params, num_heads, *,
                             compute_dtype=jnp.bfloat16,
                             tq_target=512, tk_target=256):
    """Equivalent of nn.MultiheadAttention(embed_dim, num_heads)(x, x, x)[0]."""
    L, N, E = x.shape
    H = num_heads
    D = E // H
    assert D * H == E

    w_in = params["in_proj_weight"]      # (3E, E) torch layout
    b_in = params["in_proj_bias"]        # (3E,)
    w_out = params["out_proj_weight"]    # (E, E)
    b_out = params["out_proj_bias"]      # (E,)

    # ---- one-time weight transforms (static, outside the kernels) ----------
    # fold 1/sqrt(D) into the q rows, pre-transpose to (K, N), cast to bf16.
    scale = 1.0 / math.sqrt(D)
    scale_col = jnp.concatenate([jnp.full((E,), scale, w_in.dtype),
                                 jnp.ones((2 * E,), w_in.dtype)])
    w_in_t = (w_in * scale_col[:, None]).T.astype(compute_dtype)    # (E, 3E)
    b_in_s = (b_in * scale_col).astype(jnp.float32)
    w_out_t = w_out.T.astype(compute_dtype)                         # (E, E)
    b_out_f = b_out.astype(jnp.float32)

    # ---- attention tiling / sequence padding -------------------------------
    row_budget = max(8, ((3 * 1024 * 1024) // max(4 * E, 1)) // 8 * 8)
    tk = max(8, min(tk_target, row_budget, _round_up(L, 8)))
    Lp = _round_up(L, tk)
    tq = _pick_tile(Lp, max(8, min(tq_target, row_budget)), 8)
    if N * (Lp // tq) < 2 and tq > 8:        # v7x: keep >=2 parallel grid steps
        tq_half = _pick_tile(Lp, max(8, tq // 2), 8)
        if Lp // tq_half >= 2:
            tq = tq_half

    if Lp != L:
        x = jnp.pad(x, ((0, Lp - L), (0, 0), (0, 0)))

    x2 = x.reshape(Lp * N, E).astype(compute_dtype)

    # ---- fused QKV projection (single kernel; bias folded into the acc) ----
    qkv = _linear(x2, w_in_t, b_in_s, out_dtype=compute_dtype)      # (Lp*N, 3E)
    qkv5 = qkv.reshape(Lp, N, 3, H, D)                              # free view

    # ---- flash attention straight off the packed qkv (no HBM relayout) -----
    try:
        attn = _flash_attention_packed(qkv5, L, tq, tk)             # (Lp, N, H, D)
        attn2 = attn.reshape(Lp * N, E)                             # free view
    except Exception:
        # Safety net only: head-major layout via XLA transposes (extra HBM
        # round trips) in case the packed in-kernel relayout fails to lower.
        qkv_t = jnp.transpose(qkv5, (2, 1, 3, 0, 4)).reshape(3, N * H, Lp, D)
        attn_h = _flash_attention_headmajor(qkv_t[0], qkv_t[1], qkv_t[2],
                                            L, tq, tk)
        attn2 = jnp.transpose(attn_h.reshape(N, H, Lp, D),
                              (2, 0, 1, 3)).reshape(Lp * N, E)

    # ---- output projection ---------------------------------------------------
    out = _linear(attn2, w_out_t, b_out_f, out_dtype=jnp.float32)   # (Lp*N, E)
    out = out.reshape(Lp, N, E)
    return out[:L] if Lp != L else out


def init_params(key, embed_dim):
    """Deterministic synthetic parameters (shapes match nn.MultiheadAttention)."""
    k1, k2, k3, k4 = jax.random.split(key, 4)
    bound = 1.0 / math.sqrt(embed_dim)
    return {
        "in_proj_weight": jax.random.uniform(
            k1, (3 * embed_dim, embed_dim), jnp.float32, -bound, bound),
        "in_proj_bias": jax.random.uniform(
            k2, (3 * embed_dim,), jnp.float32, -bound, bound),
        "out_proj_weight": jax.random.uniform(
            k3, (embed_dim, embed_dim), jnp.float32, -bound, bound),
        "out_proj_bias": jax.random.uniform(
            k4, (embed_dim,), jnp.float32, -bound, bound),
    }


# --------------------------- pure-JAX reference -----------------------------

def _reference(x, params, num_heads):
    L, N, E = x.shape
    H, D = num_heads, E // num_heads
    w_in, b_in = params["in_proj_weight"], params["in_proj_bias"]
    x2 = x.reshape(L * N, E)
    q = x2 @ w_in[:E].T + b_in[:E]
    k = x2 @ w_in[E:2 * E].T + b_in[E:2 * E]
    v = x2 @ w_in[2 * E:].T + b_in[2 * E:]
    to_h = lambda t: t.reshape(L, N * H, D).transpose(1, 0, 2)
    q, k, v = to_h(q), to_h(k), to_h(v)
    q = q / math.sqrt(D)                       # PyTorch scales Q before the matmul
    s = jnp.einsum("bld,bmd->blm", q, k)
    p = jax.nn.softmax(s, axis=-1)
    o = jnp.einsum("blm,bmd->bld", p, v)
    o = o.transpose(1, 0, 2).reshape(L * N, E)
    o = o @ params["out_proj_weight"].T + params["out_proj_bias"]
    return o.reshape(L, N, E)


if __name__ == "__main__":
    embed_dim, num_heads = 32, 4
    seq_len, batch = 8, 2

    key = jax.random.PRNGKey(0)
    k_param, k_x = jax.random.split(key)
    params = init_params(k_param, embed_dim)
    # PyTorch default MultiheadAttention layout: (seq_len, batch, embed_dim)
    input_data = jax.random.normal(k_x, (seq_len, batch, embed_dim), jnp.float32)

    out = multihead_self_attention(input_data, params, num_heads)
    out = jax.block_until_ready(out)

    ref = _reference(input_data, params, num_heads)
    assert out.shape == (seq_len, batch, embed_dim)
    max_err = float(jnp.max(jnp.abs(out - ref)))
    # bf16 MXU operands (f32 accumulation / softmax state) => looser parity.
    assert jnp.allclose(out, ref, atol=2e-2, rtol=2e-2), max_err

    print("KERNEL_OK")
</pallas_src>

<mosaic_0001>
module attributes {stable_mosaic.version = 11 : i64} {
  func.func @_matmul_bias_kernel(%arg0: i32, %arg1: i32, %arg2: i32, %arg3: memref<16x32xbf16, #tpu.memory_space<vmem>>, %arg4: memref<32x96xbf16, #tpu.memory_space<vmem>>, %arg5: memref<1x96xf32, #tpu.memory_space<vmem>>, %arg6: memref<16x96xbf16, #tpu.memory_space<vmem>>, %arg7: memref<16x96xf32, #tpu.memory_space<vmem>>) attributes {dimension_semantics = [#tpu.dimension_semantics<parallel>, #tpu.dimension_semantics<parallel>, #tpu.dimension_semantics<arbitrary>], iteration_bounds = array<i64: 1, 1, 1>, scalar_prefetch = 0 : i64, scratch_operands = 1 : i64, tpu.core_type = #tpu.core_type<tc>, window_params = [{transform_indices = @transform_0, window_bounds = array<i64: 16, 32>}, {transform_indices = @transform_1, window_bounds = array<i64: 32, 96>}, {transform_indices = @transform_2, window_bounds = array<i64: 1, 96>}, {transform_indices = @transform_3, window_bounds = array<i64: 16, 96>}]} {
    %c0_i32 = arith.constant 0 : i32
    %0 = arith.cmpi eq, %arg2, %c0_i32 : i32
    %1 = arith.extui %0 : i1 to i32
    %c0_i32_0 = arith.constant 0 : i32
    %2 = arith.cmpi ne, %1, %c0_i32_0 : i32
    scf.if %2 {
      %c0_10 = arith.constant 0 : index
      %c0_11 = arith.constant 0 : index
      %12 = vector.load %arg5[%c0_10, %c0_11] : memref<1x96xf32, #tpu.memory_space<vmem>>, vector<1x96xf32>
      %13 = vector.shape_cast %12 : vector<1x96xf32> to vector<1x96xf32>
      %14 = vector.broadcast %13 : vector<1x96xf32> to vector<16x96xf32>
      %c0_12 = arith.constant 0 : index
      %c0_13 = arith.constant 0 : index
      %15 = vector.load %arg7[%c0_12, %c0_13] : memref<16x96xf32, #tpu.memory_space<vmem>>, vector<16x96xf32>
      tpu.vector_store %arg7[%c0_12, %c0_13], %14 {strides = array<i32>} : memref<16x96xf32, #tpu.memory_space<vmem>>, vector<16x96xf32>,
    } else {
    }
    %c0 = arith.constant 0 : index
    %c0_1 = arith.constant 0 : index
    %3 = vector.load %arg7[%c0, %c0_1] : memref<16x96xf32, #tpu.memory_space<vmem>>, vector<16x96xf32>
    %c0_2 = arith.constant 0 : index
    %c0_3 = arith.constant 0 : index
    %4 = vector.load %arg3[%c0_2, %c0_3] : memref<16x32xbf16, #tpu.memory_space<vmem>>, vector<16x32xbf16>
    %c0_4 = arith.constant 0 : index
    %c0_5 = arith.constant 0 : index
    %5 = vector.load %arg4[%c0_4, %c0_5] : memref<32x96xbf16, #tpu.memory_space<vmem>>, vector<32x96xbf16>
    %cst = arith.constant dense<0.000000e+00> : vector<16x96xf32>
    %6 = tpu.matmul %4, %5, %cst {dimension_numbers = #tpu.dot_dimension_numbers<[1], [0], [0], [1], [0, 0, 1, 1], [], []>} : vector<16x32xbf16>, vector<32x96xbf16>, vector<16x96xf32> -> vector<16x96xf32>
    %7 = arith.addf %3, %6 : vector<16x96xf32>
    %c0_6 = arith.constant 0 : index
    %c0_7 = arith.constant 0 : index
    %8 = vector.load %arg7[%c0_6, %c0_7] : memref<16x96xf32, #tpu.memory_space<vmem>>, vector<16x96xf32>
    tpu.vector_store %arg7[%c0_6, %c0_7], %7 {strides = array<i32>} : memref<16x96xf32, #tpu.memory_space<vmem>>, vector<16x96xf32>,
    %c0_i32_8 = arith.constant 0 : i32
    %9 = arith.cmpi eq, %arg2, %c0_i32_8 : i32
    %10 = arith.extui %9 : i1 to i32
    %c0_i32_9 = arith.constant 0 : i32
    %11 = arith.cmpi ne, %10, %c0_i32_9 : i32
    scf.if %11 {
      %c0_10 = arith.constant 0 : index
      %c0_11 = arith.constant 0 : index
      %12 = vector.load %arg7[%c0_10, %c0_11] : memref<16x96xf32, #tpu.memory_space<vmem>>, vector<16x96xf32>
      %13 = arith.truncf %12 : vector<16x96xf32> to vector<16x96xbf16>
      %c0_12 = arith.constant 0 : index
      %c0_13 = arith.constant 0 : index
      %14 = vector.load %arg6[%c0_12, %c0_13] : memref<16x96xbf16, #tpu.memory_space<vmem>>, vector<16x96xbf16>
      tpu.vector_store %arg6[%c0_12, %c0_13], %13 {strides = array<i32>} : memref<16x96xbf16, #tpu.memory_space<vmem>>, vector<16x96xbf16>,
    } else {
    }
    return
  }
  func.func @transform_0(%arg0: i32, %arg1: i32, %arg2: i32) -> (i32, i32) {
    %c0_i32 = arith.constant 0 : i32
    return %arg0, %arg2 : i32, i32
  }
  func.func @transform_1(%arg0: i32, %arg1: i32, %arg2: i32) -> (i32, i32) {
    %c0_i32 = arith.constant 0 : i32
    return %arg2, %arg1 : i32, i32
  }
  func.func @transform_2(%arg0: i32, %arg1: i32, %arg2: i32) -> (i32, i32) {
    %c0_i32 = arith.constant 0 : i32
    %c0_i32_0 = arith.constant 0 : i32
    return %c0_i32, %arg1 : i32, i32
  }
  func.func @transform_3(%arg0: i32, %arg1: i32, %arg2: i32) -> (i32, i32) {
    %c0_i32 = arith.constant 0 : i32
    return %arg0, %arg1 : i32, i32
  }
}

</mosaic_0001>

<llo_original>
// kernel: tpu_custom_call.1
$region0: #{tpu_custom_call.1}
  #allocation0 [shape = 'u32[]', space=smem, size = 0x4, offset = 0x4, fixed_abs, tag = 'smem constant byte address 0x4 - core index']
  #allocation1 [shape = 'u32[144,128]{1,0:T(1,128)}', space=vmem, size = 0x12000, scoped, tag = 'internal scratch']
  #allocation2 [shape = 'f32[16,96]{1,0:T(8,128)}', space=vmem, size = 0x2000, scoped, tag = 'scratch operand']
  %s0 = inlined_call_operand.hbm [shape: bf16[16,32], index: 0, kind: input, shape index: {}]
  %s1 = inlined_call_operand.hbm [shape: bf16[32,96], index: 1, kind: input, shape index: {}]
  %s2 = inlined_call_operand.vmem [shape: f32[1,96], index: 2, kind: input, shape index: {}]
  %s3 = inlined_call_operand.hbm [shape: bf16[16,96], index: 3, kind: output, shape index: {}]
  %s4 = sld [smem:[#allocation0]]
  $region38: #{tpu_custom_call.1} parent=0
    _
  %s6 = ssub.s32 1, %s4
  %s7 = scalar_select 0, %s6, %s4
  $region1: #{tpu_custom_call.1} parent=0
    #allocation3 [shape = 'u8[4096]{0}', space=vmem, size = 0x1000, scoped, tag = 'input window, operand 0, single buffered']
    #allocation4 [shape = 's32[1]{0}', space=sflag, size = 0x4, scoped, tag = 'scoped memory for tpu_custom_call.1']
    #allocation5 [shape = 's32[1]{0}', space=sflag, size = 0x4, scoped, tag = 'scoped memory for tpu_custom_call.1']
    #allocation6 [shape = 'u8[8192]{0}', space=vmem, size = 0x2000, scoped, tag = 'input window, operand 1, single buffered']
    #allocation7 [shape = 's32[1]{0}', space=sflag, size = 0x4, scoped, tag = 'scoped memory for tpu_custom_call.1']
    #allocation8 [shape = 'u8[4096]{0}', space=vmem, size = 0x1000, scoped, tag = 'output window, operand 0, single buffered']
    %8 = vsyncpa [#allocation4], 0
    %9 = vsyncpa [#allocation7], 0
    %10 = vsyncpa [#allocation5], 0
    // Predicated region
    $region2: #{tpu_custom_call.1} parent=1 // pred_check
      _
    $region3: #{tpu_custom_call.1} parent=1 // pred_check_branch
      %12 = sbr.rel (0) target = $region5
    $region4: #{tpu_custom_call.1} parent=1 // pred_region
      %s14 = ssub.s32 128, 128
      %15 = vsyncadd [#allocation4], %s14
      %s16 = sshll.u32 [#allocation3], 4
      %s17 = int_to_ptr.vmem [resolvable:$true] %s16
      %22 = dma.hbm_to_vmem [thread:$0]  %s0, 128, %s17, [#allocation4], 64, 64, 4
    $region5: #{tpu_custom_call.1} parent=1 // pred_fallthru
      _
    // Predicated region
    $region6: #{tpu_custom_call.1} parent=1 // pred_check
      _
    $region7: #{tpu_custom_call.1} parent=1 // pred_check_branch
      %24 = sbr.rel (0) target = $region9
    $region8: #{tpu_custom_call.1} parent=1 // pred_region
      %s26 = ssub.s32 256, 256
      %27 = vsyncadd [#allocation7], %s26
      %s28 = sshll.u32 [#allocation6], 4
      %s29 = int_to_ptr.vmem [resolvable:$true] %s28
      %34 = dma.hbm_to_vmem [thread:$0]  %s1, 256, %s29, [#allocation7], 64, 64, 4
    $region9: #{tpu_custom_call.1} parent=1 // pred_fallthru
      _
    // Predicated region
    $region10: #{tpu_custom_call.1} parent=1 // pred_check
      _
    $region11: #{tpu_custom_call.1} parent=1 // pred_check_branch
      %36 = sbr.rel (0) target = $region13
    $region12: #{tpu_custom_call.1} parent=1 // pred_region
      _
    $region13: #{tpu_custom_call.1} parent=1 // pred_fallthru
      _
    // Predicated region
    $region14: #{tpu_custom_call.1} parent=1 // pred_check
      _
    $region15: #{tpu_custom_call.1} parent=1 // pred_check_branch
      %38 = sbr.rel (0) target = $region17
    $region16: #{tpu_custom_call.1} parent=1 // pred_region
      %39 = dma.done [#allocation4], 128
    $region17: #{tpu_custom_call.1} parent=1 // pred_fallthru
      _
    // Predicated region
    $region18: #{tpu_custom_call.1} parent=1 // pred_check
      _
    $region19: #{tpu_custom_call.1} parent=1 // pred_check_branch
      %41 = sbr.rel (0) target = $region21
    $region20: #{tpu_custom_call.1} parent=1 // pred_region
      %42 = dma.done [#allocation7], 256
    $region21: #{tpu_custom_call.1} parent=1 // pred_fallthru
      _
    %p44 = scmp.eq.s32.totalorder 0, 0
    // Predicated region
    $region22: #{tpu_custom_call.1} parent=1 // pred_check
      %p45 = pneg %p44
    $region23: #{tpu_custom_call.1} parent=1 // pred_check_branch
      %47 = sbr.rel (%p45) target = $region25
    $region24: #{tpu_custom_call.1} parent=1 // pred_region
      %v48 = vld [vmem:[%s2] sm:$0x1]
      %v50 = vlaneseq
      %v51 = vshrl.u32 %v50, 7
      %v52 = vsub.s32 0, %v51
      %v53 = vrot.slane %v48, %v52
      %vm55 = vcmask 785408
      %56 = vst.msk [vmem:[#allocation2] sm:$0xff] %vm55, %v53
      %57 = vst.msk [vmem:[#allocation2 + $0x8] sm:$0xff] %vm55, %v53
    $region25: #{tpu_custom_call.1} parent=1 // pred_fallthru
      _
    %v58 = vld [vmem:[#allocation2] sm:$0xff]
    %v59 = vld [vmem:[#allocation2 + $0x8] sm:$0xff]
    %v60 = vld [vmem:[#allocation3] sm:$0xf]
    %v61 = vld [vmem:[#allocation3 + $0x4] sm:$0xf]
    %v62 = vld [vmem:[#allocation6] sm:$0xf]
    %v63 = vld [vmem:[#allocation6 + $0x4] sm:$0xf]
    %v64 = vld [vmem:[#allocation6 + $0x8] sm:$0xf]
    %v65 = vld [vmem:[#allocation6 + $0xc] sm:$0xf]
    %v68 = vunpack.c.l.b16 %v60
    %v69 = vunpack.c.l.b16 %v61
    %v70 = vpack.c.b16 %v69, %v68
    %v75 = vunpack.c.l.b16 %v62
    %v76 = vunpack.c.l.b16 %v63
    %v77 = vunpack.c.l.b16 %v64
    %v78 = vunpack.c.l.b16 %v65
    %v79 = vpack.c.b16 %v76, %v75
    %v80 = vpack.c.b16 %v78, %v77
    %vm83 = vcmask 261120
    %v85 = vsel %vm83, %v70, 0
    %87 = vmatprep.subr.bf16.mxu0 0
    %88 = vmatpush1.bf16.msra.mxu0 %v79
    %89 = vmatprep.subr.bf16.mxu0 0
    %90 = vmatpush1.bf16.msra.mxu0 %v80
    %91 = vmatprep.subr.bf16.mxu0 0
    %92 = vmatpush1.bf16.msra.mxu0 0
    %93 = vmatprep.subr.bf16.mxu0 0
    %94 = vmatpush1.bf16.msra.mxu0 0
    %95 = vmatprep.subr.bf16.mxu0 0
    %96 = vmatpush1.bf16.msra.mxu0 0
    %97 = vmatprep.subr.bf16.mxu0 0
    %98 = vmatpush1.bf16.msra.mxu0 0
    %99 = vmatprep.subr.bf16.mxu0 0
    %100 = vmatpush1.bf16.msra.mxu0 0
    %101 = vmatprep.subr.bf16.mxu0 0
    %102 = vmatpush1.bf16.msra.mxu0 0
    %103 = vmatprep.subr.bf16.mxu0 0
    %104 = vmatpush1.bf16.msra.mxu0 0
    %105 = vmatprep.subr.bf16.mxu0 0
    %106 = vmatpush1.bf16.msra.mxu0 0
    %107 = vmatprep.subr.bf16.mxu0 0
    %108 = vmatpush1.bf16.msra.mxu0 0
    %109 = vmatprep.subr.bf16.mxu0 0
    %110 = vmatpush1.bf16.msra.mxu0 0
    %111 = vmatprep.subr.bf16.mxu0 0
    %112 = vmatpush1.bf16.msra.mxu0 0
    %113 = vmatprep.subr.bf16.mxu0 0
    %114 = vmatpush1.bf16.msra.mxu0 0
    %115 = vmatprep.subr.bf16.mxu0 0
    %116 = vmatpush1.bf16.msra.mxu0 0
    %117 = vmatprep.subr.bf16.mxu0 0
    %118 = vmatpush1.bf16.msra.mxu0 0
    %119 = vmatprep.mubr.bf16.mxu0 0
    %120 = vmatmul.mubr.bf16.gmra.mrb[0].mxu0 %v85
    %v121 = vpop.f32.mrb[0].mxu0
    %v122 = vadd.f32 0.0, %v121
    %v123 = vpop.f32.mrb[0].mxu0
    %v124 = vpop.f32.mrb[0].mxu0
    %v125 = vadd.f32 0.0, %v124
    %v126 = vpop.f32.mrb[0].mxu0
    %127 = vdwg.mxu0
    %v128 = vadd.f32 %v58, %v122
    %v129 = vadd.f32 %v59, %v125
    %vm130 = vcmask 785408
    %131 = vst.msk [vmem:[#allocation2] sm:$0xff] %vm130, %v128
    %132 = vst.msk [vmem:[#allocation2 + $0x8] sm:$0xff] %vm130, %v129
    // Predicated region
    $region26: #{tpu_custom_call.1} parent=1 // pred_check
      %p133 = pneg %p44
    $region27: #{tpu_custom_call.1} parent=1 // pred_check_branch
      %135 = sbr.rel (%p133) target = $region29
    $region28: #{tpu_custom_call.1} parent=1 // pred_region
      %v136 = vld [vmem:[#allocation2] sm:$0xff]
      %v137 = vld [vmem:[#allocation2 + $0x8] sm:$0xff]
      %v138 = vpack.c.bf16 %v137, %v136
      %v140 = vunpack.c.l.b16 %v138
      %v141 = vunpack.c.h.b16 %v138
      %v142 = vpack.c.b16 %v140, %v140
      %v143 = vpack.c.b16 %v141, %v141
      %vm146 = vcmask 781312
      %147 = vst.msk [vmem:[#allocation8] sm:$0xf] %vm146, %v142
      %148 = vst.msk [vmem:[#allocation8 + $0x4] sm:$0xf] %vm146, %v143
    $region29: #{tpu_custom_call.1} parent=1 // pred_fallthru
      _
    // Predicated region
    $region30: #{tpu_custom_call.1} parent=1 // pred_check
      _
    $region31: #{tpu_custom_call.1} parent=1 // pred_check_branch
      %150 = sbr.rel (0) target = $region33
    $region32: #{tpu_custom_call.1} parent=1 // pred_region
      %s152 = ssub.s32 128, 128
      %153 = vsyncadd [#allocation5], %s152
      %s154 = sshll.u32 [#allocation8], 4
      %s155 = int_to_ptr.vmem [resolvable:$true] %s154
      %160 = dma.vmem_to_hbm [thread:$0]  %s155, 128, %s3, [#allocation5], 64, 64, 4
    $region33: #{tpu_custom_call.1} parent=1 // pred_fallthru
      _
    // Predicated region
    $region34: #{tpu_custom_call.1} parent=1 // pred_check
      _
    $region35: #{tpu_custom_call.1} parent=1 // pred_check_branch
      %162 = sbr.rel (0) target = $region37
    $region36: #{tpu_custom_call.1} parent=1 // pred_region
      %163 = dma.done [#allocation5], 128
    $region37: #{tpu_custom_call.1} parent=1 // pred_fallthru
      _
    %164 = vsyncpa [#allocation4], 1
    %165 = vsyncpa [#allocation7], 1
    %166 = vsyncpa [#allocation5], 1

</llo_original>
